<compile_context>
chip_gen: v7x
topology: tpu7x:2x2x1
jax: 0.10.0
libtpu: 0.0.40
codegen_flags: <defaults>
</compile_context>

<pallas_src>
import jax
import jax.numpy as jnp
from jax import lax
from jax.experimental import pallas as pl
from jax.experimental.pallas import tpu as pltpu

TEMPERATURE = 0.07
BASE_TEMPERATURE = 0.07
# TODO(synk): contrast_mode == 'one' (single-anchor-view) variant not implemented.


def _dense_contrastive_kernel(x_ref, lab_row_ref, lab_col_ref, out_ref,
                              gram_acc, rsq_acc, csq_acc):
    """One K-chunk of the contraction; finalize on the last chunk.

    x_ref:       [N, tk] f32   K-chunk of the flattened contrast features
    lab_row_ref: [N, 1]  i32   per-row labels (row-oriented)
    lab_col_ref: [1, N]  i32   per-row labels (lane-oriented)
    out_ref:     [1, 1]  f32   sum of per-anchor losses (mean done outside)
    gram_acc:    [N, N]  f32   Gram accumulator
    rsq_acc:     [N, 1]  f32   row squared-norm accumulator
    csq_acc:     [1, N]  f32   column squared-norm accumulator (lane-oriented)
    """
    k = pl.program_id(0)

    @pl.when(k == 0)
    def _init():
        gram_acc[...] = jnp.zeros_like(gram_acc)
        rsq_acc[...] = jnp.zeros_like(rsq_acc)
        csq_acc[...] = jnp.zeros_like(csq_acc)

    x = x_ref[...]                                    # [N, tk] f32
    xsq = x * x
    # Gram via dot_general contracting the last dims (no x.T / XLU transpose).
    gram_acc[...] += lax.dot_general(
        x, x, dimension_numbers=(((1,), (1,)), ((), ())),
        preferred_element_type=jnp.float32)           # [N, N]
    rsq_acc[...] += jnp.sum(xsq, axis=1, keepdims=True)          # [N, 1]
    # Lane-oriented squared norms via a ones-row matmul (avoids a small transpose).
    ones_row = jnp.ones((1, x.shape[1]), jnp.float32)
    csq_acc[...] += lax.dot_general(
        ones_row, xsq, dimension_numbers=(((1,), (1,)), ((), ())),
        preferred_element_type=jnp.float32)           # [1, N]

    @pl.when(k == pl.num_programs(0) - 1)
    def _finalize():
        gram = gram_acc[...]
        n = gram.shape[0]
        # ||xi - xj||^2 = ||xi||^2 + ||xj||^2 - 2<xi,xj>  (clamped for f32 safety)
        dist = jnp.maximum(rsq_acc[...] + csq_acc[...] - 2.0 * gram, 0.0)
        adc = dist * (-1.0 / TEMPERATURE)
        logits = adc - jnp.max(adc, axis=1, keepdims=True)

        rows = lax.broadcasted_iota(jnp.int32, (n, n), 0)
        cols = lax.broadcasted_iota(jnp.int32, (n, n), 1)
        not_self = rows != cols
        same_label = lab_row_ref[...] == lab_col_ref[...]        # [N,1]==[1,N] -> [N,N]
        logits_maskf = not_self.astype(jnp.float32)
        posf = jnp.where(jnp.logical_and(same_label, not_self), 1.0, 0.0)

        exp_logits = jnp.exp(logits) * logits_maskf
        log_denom = jnp.log(jnp.sum(exp_logits, axis=1, keepdims=True) + 1e-10)

        pos_cnt = jnp.sum(posf, axis=1, keepdims=True)
        pos_logit_sum = jnp.sum(posf * logits, axis=1, keepdims=True)
        safe_cnt = jnp.where(pos_cnt < 1e-6, 1.0, pos_cnt)
        # sum(mask * log_prob) == sum(mask * logits) - log(denom) * sum(mask)
        mean_log_prob_pos = (pos_logit_sum - log_denom * pos_cnt) / safe_cnt
        per_row = (-(TEMPERATURE / BASE_TEMPERATURE)) * mean_log_prob_pos  # [N,1]
        out_ref[...] = jnp.sum(per_row, axis=0, keepdims=True)             # [1,1]


def _pick_block_k(N, D, block_k=None, max_stream_bytes=8 << 20):
    """Largest multiple-of-128 divisor of D within the double-buffer VMEM budget."""
    if block_k is not None:
        if D % block_k != 0 or not (block_k == D or block_k % 128 == 0):
            raise ValueError("block_k must divide D and be a multiple of 128 (or == D)")
        return block_k
    if D <= 512:
        return D
    cap = max(128, max_stream_bytes // (2 * 4 * N))
    best = 0
    t = 128
    while t <= min(D, cap):
        if D % t == 0:
            best = t
        t += 128
    return best if best else D   # fallback: single chunk (block == full D is legal)


def dense_contrastive_loss(features, labels=None, mask=None, *, block_k=None):
    """features: [B, V, C, H, W]; labels: optional [B] ints."""
    if labels is not None and mask is not None:
        raise ValueError("Cannot define both `labels` and `mask`")
    if mask is not None:
        # TODO(synk): explicit user-provided [B,B] mask would need a dense-mask input
        # path; only `labels` / default eye mask are supported by this kernel.
        raise NotImplementedError("explicit `mask` argument is not supported")

    B, V = features.shape[0], features.shape[1]
    # Free reshape (contiguous collapse): rows are batch-major (n = b*V + v).
    # The loss (mean over all N rows) is invariant to this row permutation, so it
    # equals torch's view-major torch.cat(torch.unbind(features, 1), 0) ordering.
    x = features.reshape(B * V, -1).astype(jnp.float32)
    N, D = x.shape

    if labels is None:
        lab = jnp.arange(B, dtype=jnp.int32)          # each sample its own class == eye(B)
    else:
        lab = jnp.asarray(labels).reshape(-1).astype(jnp.int32)
        if lab.shape[0] != B:
            raise ValueError("Num of labels does not match num of features")
    row_lab = jnp.repeat(lab, V)                      # row n -> batch index n // V
    lab_row = row_lab.reshape(N, 1)
    lab_col = row_lab.reshape(1, N)

    tk = _pick_block_k(N, D, block_k)
    kc = D // tk

    cost = pl.CostEstimate(
        flops=2 * N * N * D + 4 * N * D,
        transcendentals=N * N + N,
        bytes_accessed=4 * (N * D + 2 * N + 1),
    )

    loss_sum = pl.pallas_call(
        _dense_contrastive_kernel,
        out_shape=jax.ShapeDtypeStruct((1, 1), jnp.float32),
        grid_spec=pltpu.PrefetchScalarGridSpec(
            num_scalar_prefetch=0,
            grid=(kc,),
            in_specs=[
                pl.BlockSpec((N, tk), lambda k: (0, k)),   # streamed K-chunks of x
                pl.BlockSpec((N, 1), lambda k: (0, 0)),    # row labels (fetched once)
                pl.BlockSpec((1, N), lambda k: (0, 0)),    # col labels (fetched once)
            ],
            out_specs=pl.BlockSpec((1, 1), lambda k: (0, 0)),
            scratch_shapes=[
                pltpu.VMEM((N, N), jnp.float32),           # Gram accumulator
                pltpu.VMEM((N, 1), jnp.float32),           # row ||x||^2 accumulator
                pltpu.VMEM((1, N), jnp.float32),           # col ||x||^2 accumulator
            ],
        ),
        compiler_params=pltpu.CompilerParams(
            dimension_semantics=("arbitrary",),            # K is the reduction axis
            vmem_limit_bytes=32 * 1024 * 1024,
        ),
        cost_estimate=cost,
    )(x, lab_row, lab_col)

    # loss.view(anchor_count, batch_size).mean() == mean over all N rows.
    return loss_sum[0, 0] / N


if __name__ == "__main__":
    key = jax.random.PRNGKey(0)
    B, V, C, H, W = 2, 4, 4, 16, 16          # N = V*B = 8, D = C*H*W = 1024
    features = jax.random.normal(key, (B, V, C, H, W), dtype=jnp.float32)

    # block_k=256 -> 4 K-chunks, exercising the accumulate/finalize pipeline.
    loss = dense_contrastive_loss(features, block_k=256)
    jax.block_until_ready(loss)
    print("KERNEL_OK")
</pallas_src>

<mosaic_0001>
module attributes {stable_mosaic.version = 11 : i64} {
  func.func @_dense_contrastive_kernel(%arg0: i32, %arg1: memref<8x256xf32, #tpu.memory_space<vmem>>, %arg2: memref<8x1xi32, #tpu.memory_space<vmem>>, %arg3: memref<1x8xi32, #tpu.memory_space<vmem>>, %arg4: memref<1x1xf32, #tpu.memory_space<vmem>>, %arg5: memref<8x8xf32, #tpu.memory_space<vmem>>, %arg6: memref<8x1xf32, #tpu.memory_space<vmem>>, %arg7: memref<1x8xf32, #tpu.memory_space<vmem>>) attributes {dimension_semantics = [#tpu.dimension_semantics<arbitrary>], iteration_bounds = array<i64: 4>, scalar_prefetch = 0 : i64, scratch_operands = 3 : i64, tpu.core_type = #tpu.core_type<tc>, window_params = [{transform_indices = @transform_0, window_bounds = array<i64: 8, 256>}, {pipeline_mode = #tpu.pipeline_mode<synchronous>, transform_indices = @transform_1, window_bounds = array<i64: 8, 1>}, {pipeline_mode = #tpu.pipeline_mode<synchronous>, transform_indices = @transform_2, window_bounds = array<i64: 1, 8>}, {pipeline_mode = #tpu.pipeline_mode<synchronous>, transform_indices = @transform_3, window_bounds = array<i64: 1, 1>}]} {
    %c0_i32 = arith.constant 0 : i32
    %0 = arith.cmpi eq, %arg0, %c0_i32 : i32
    %1 = arith.extui %0 : i1 to i32
    %c0_i32_0 = arith.constant 0 : i32
    %2 = arith.cmpi ne, %1, %c0_i32_0 : i32
    scf.if %2 {
      %cst_18 = arith.constant 0.000000e+00 : f32
      %22 = vector.broadcast %cst_18 : f32 to vector<8x8xf32>
      %c0_19 = arith.constant 0 : index
      %c0_20 = arith.constant 0 : index
      %23 = vector.load %arg5[%c0_19, %c0_20] : memref<8x8xf32, #tpu.memory_space<vmem>>, vector<8x8xf32>
      tpu.vector_store %arg5[%c0_19, %c0_20], %22 {strides = array<i32>} : memref<8x8xf32, #tpu.memory_space<vmem>>, vector<8x8xf32>,
      %cst_21 = arith.constant 0.000000e+00 : f32
      %24 = vector.broadcast %cst_21 : f32 to vector<8x1xf32>
      %c0_22 = arith.constant 0 : index
      %c0_23 = arith.constant 0 : index
      %25 = vector.load %arg6[%c0_22, %c0_23] : memref<8x1xf32, #tpu.memory_space<vmem>>, vector<8x1xf32>
      tpu.vector_store %arg6[%c0_22, %c0_23], %24 {strides = array<i32>} : memref<8x1xf32, #tpu.memory_space<vmem>>, vector<8x1xf32>,
      %cst_24 = arith.constant 0.000000e+00 : f32
      %26 = vector.broadcast %cst_24 : f32 to vector<1x8xf32>
      %c0_25 = arith.constant 0 : index
      %c0_26 = arith.constant 0 : index
      %27 = vector.load %arg7[%c0_25, %c0_26] : memref<1x8xf32, #tpu.memory_space<vmem>>, vector<1x8xf32>
      tpu.vector_store %arg7[%c0_25, %c0_26], %26 {strides = array<i32>} : memref<1x8xf32, #tpu.memory_space<vmem>>, vector<1x8xf32>,
    } else {
    }
    %c0 = arith.constant 0 : index
    %c0_1 = arith.constant 0 : index
    %3 = vector.load %arg1[%c0, %c0_1] : memref<8x256xf32, #tpu.memory_space<vmem>>, vector<8x256xf32>
    %4 = arith.mulf %3, %3 : vector<8x256xf32>
    %c0_2 = arith.constant 0 : index
    %c0_3 = arith.constant 0 : index
    %5 = vector.load %arg5[%c0_2, %c0_3] : memref<8x8xf32, #tpu.memory_space<vmem>>, vector<8x8xf32>
    %cst = arith.constant dense<0.000000e+00> : vector<8x8xf32>
    %6 = tpu.matmul %3, %3, %cst {dimension_numbers = #tpu.dot_dimension_numbers<[1], [1], [0], [0], [0, 0, 1, 0], [], []>} : vector<8x256xf32>, vector<8x256xf32>, vector<8x8xf32> -> vector<8x8xf32>
    %7 = arith.addf %5, %6 : vector<8x8xf32>
    %c0_4 = arith.constant 0 : index
    %c0_5 = arith.constant 0 : index
    %8 = vector.load %arg5[%c0_4, %c0_5] : memref<8x8xf32, #tpu.memory_space<vmem>>, vector<8x8xf32>
    tpu.vector_store %arg5[%c0_4, %c0_5], %7 {strides = array<i32>} : memref<8x8xf32, #tpu.memory_space<vmem>>, vector<8x8xf32>,
    %c0_6 = arith.constant 0 : index
    %c0_7 = arith.constant 0 : index
    %9 = vector.load %arg6[%c0_6, %c0_7] : memref<8x1xf32, #tpu.memory_space<vmem>>, vector<8x1xf32>
    %cst_8 = arith.constant dense<0.000000e+00> : vector<8xf32>
    %10 = vector.multi_reduction <add>, %4, %cst_8 [1] : vector<8x256xf32> to vector<8xf32>
    %11 = vector.shape_cast %10 : vector<8xf32> to vector<8x1xf32>
    %12 = arith.addf %9, %11 : vector<8x1xf32>
    %c0_9 = arith.constant 0 : index
    %c0_10 = arith.constant 0 : index
    %13 = vector.load %arg6[%c0_9, %c0_10] : memref<8x1xf32, #tpu.memory_space<vmem>>, vector<8x1xf32>
    tpu.vector_store %arg6[%c0_9, %c0_10], %12 {strides = array<i32>} : memref<8x1xf32, #tpu.memory_space<vmem>>, vector<8x1xf32>,
    %cst_11 = arith.constant 1.000000e+00 : f32
    %14 = vector.broadcast %cst_11 : f32 to vector<1x256xf32>
    %c0_12 = arith.constant 0 : index
    %c0_13 = arith.constant 0 : index
    %15 = vector.load %arg7[%c0_12, %c0_13] : memref<1x8xf32, #tpu.memory_space<vmem>>, vector<1x8xf32>
    %cst_14 = arith.constant dense<0.000000e+00> : vector<1x8xf32>
    %16 = tpu.matmul %14, %4, %cst_14 {dimension_numbers = #tpu.dot_dimension_numbers<[1], [1], [0], [0], [0, 0, 1, 0], [], []>} : vector<1x256xf32>, vector<8x256xf32>, vector<1x8xf32> -> vector<1x8xf32>
    %17 = arith.addf %15, %16 : vector<1x8xf32>
    %c0_15 = arith.constant 0 : index
    %c0_16 = arith.constant 0 : index
    %18 = vector.load %arg7[%c0_15, %c0_16] : memref<1x8xf32, #tpu.memory_space<vmem>>, vector<1x8xf32>
    tpu.vector_store %arg7[%c0_15, %c0_16], %17 {strides = array<i32>} : memref<1x8xf32, #tpu.memory_space<vmem>>, vector<1x8xf32>,
    %c3_i32 = arith.constant 3 : i32
    %19 = arith.cmpi eq, %arg0, %c3_i32 : i32
    %20 = arith.extui %19 : i1 to i32
    %c0_i32_17 = arith.constant 0 : i32
    %21 = arith.cmpi ne, %20, %c0_i32_17 : i32
    scf.if %21 {
      %c0_18 = arith.constant 0 : index
      %c0_19 = arith.constant 0 : index
      %22 = vector.load %arg5[%c0_18, %c0_19] : memref<8x8xf32, #tpu.memory_space<vmem>>, vector<8x8xf32>
      %c0_20 = arith.constant 0 : index
      %c0_21 = arith.constant 0 : index
      %23 = vector.load %arg6[%c0_20, %c0_21] : memref<8x1xf32, #tpu.memory_space<vmem>>, vector<8x1xf32>
      %c0_22 = arith.constant 0 : index
      %c0_23 = arith.constant 0 : index
      %24 = vector.load %arg7[%c0_22, %c0_23] : memref<1x8xf32, #tpu.memory_space<vmem>>, vector<1x8xf32>
      %25 = vector.broadcast %23 : vector<8x1xf32> to vector<8x8xf32>
      %26 = vector.broadcast %24 : vector<1x8xf32> to vector<8x8xf32>
      %27 = arith.addf %25, %26 : vector<8x8xf32>
      %cst_24 = arith.constant 2.000000e+00 : f32
      %28 = vector.broadcast %cst_24 : f32 to vector<8x8xf32>
      %29 = arith.mulf %28, %22 : vector<8x8xf32>
      %30 = arith.subf %27, %29 : vector<8x8xf32>
      %cst_25 = arith.constant 0.000000e+00 : f32
      %31 = vector.broadcast %cst_25 : f32 to vector<8x8xf32>
      %32 = arith.maximumf %30, %31 : vector<8x8xf32>
      %cst_26 = arith.constant -14.2857141 : f32
      %33 = vector.broadcast %cst_26 : f32 to vector<8x8xf32>
      %34 = arith.mulf %32, %33 : vector<8x8xf32>
      %cst_27 = arith.constant dense<0xFF800000> : vector<8xf32>
      %35 = vector.multi_reduction <maximumf>, %34, %cst_27 [1] : vector<8x8xf32> to vector<8xf32>
      %36 = vector.shape_cast %35 : vector<8xf32> to vector<8x1xf32>
      %37 = vector.broadcast %36 : vector<8x1xf32> to vector<8x8xf32>
      %38 = arith.subf %34, %37 : vector<8x8xf32>
      %39 = tpu.iota {dimensions = array<i32: 0>} : vector<8x8xi32>
      %40 = tpu.iota {dimensions = array<i32: 1>} : vector<8x8xi32>
      %41 = arith.cmpi ne, %39, %40 : vector<8x8xi32>
      %c0_28 = arith.constant 0 : index
      %c0_29 = arith.constant 0 : index
      %42 = vector.load %arg2[%c0_28, %c0_29] : memref<8x1xi32, #tpu.memory_space<vmem>>, vector<8x1xi32>
      %c0_30 = arith.constant 0 : index
      %c0_31 = arith.constant 0 : index
      %43 = vector.load %arg3[%c0_30, %c0_31] : memref<1x8xi32, #tpu.memory_space<vmem>>, vector<1x8xi32>
      %44 = vector.broadcast %42 : vector<8x1xi32> to vector<8x8xi32>
      %45 = vector.broadcast %43 : vector<1x8xi32> to vector<8x8xi32>
      %46 = arith.cmpi eq, %44, %45 : vector<8x8xi32>
      %47 = arith.extui %41 : vector<8x8xi1> to vector<8x8xi32>
      %48 = arith.sitofp %47 : vector<8x8xi32> to vector<8x8xf32>
      %49 = arith.andi %46, %41 : vector<8x8xi1>
      %cst_32 = arith.constant 1.000000e+00 : f32
      %cst_33 = arith.constant 0.000000e+00 : f32
      %50 = vector.broadcast %cst_32 : f32 to vector<8x8xf32>
      %51 = vector.broadcast %cst_33 : f32 to vector<8x8xf32>
      %52 = arith.select %49, %50, %51 : vector<8x8xi1>, vector<8x8xf32>
      %53 = math.exp %38 : vector<8x8xf32>
      %54 = arith.mulf %53, %48 : vector<8x8xf32>
      %cst_34 = arith.constant dense<0.000000e+00> : vector<8xf32>
      %55 = vector.multi_reduction <add>, %54, %cst_34 [1] : vector<8x8xf32> to vector<8xf32>
      %56 = vector.shape_cast %55 : vector<8xf32> to vector<8x1xf32>
      %cst_35 = arith.constant 1.000000e-10 : f32
      %57 = vector.broadcast %cst_35 : f32 to vector<8x1xf32>
      %58 = arith.addf %56, %57 : vector<8x1xf32>
      %59 = math.log %58 : vector<8x1xf32>
      %cst_36 = arith.constant dense<0.000000e+00> : vector<8xf32>
      %60 = vector.multi_reduction <add>, %52, %cst_36 [1] : vector<8x8xf32> to vector<8xf32>
      %61 = vector.shape_cast %60 : vector<8xf32> to vector<8x1xf32>
      %62 = arith.mulf %52, %38 : vector<8x8xf32>
      %cst_37 = arith.constant dense<0.000000e+00> : vector<8xf32>
      %63 = vector.multi_reduction <add>, %62, %cst_37 [1] : vector<8x8xf32> to vector<8xf32>
      %64 = vector.shape_cast %63 : vector<8xf32> to vector<8x1xf32>
      %cst_38 = arith.constant 9.99999997E-7 : f32
      %65 = vector.broadcast %cst_38 : f32 to vector<8x1xf32>
      %66 = arith.cmpf olt, %61, %65 : vector<8x1xf32>
      %cst_39 = arith.constant 1.000000e+00 : f32
      %67 = vector.broadcast %cst_39 : f32 to vector<8x1xf32>
      %68 = arith.select %66, %67, %61 : vector<8x1xi1>, vector<8x1xf32>
      %69 = arith.mulf %59, %61 : vector<8x1xf32>
      %70 = arith.subf %64, %69 : vector<8x1xf32>
      %71 = arith.divf %70, %68 : vector<8x1xf32>
      %cst_40 = arith.constant -1.000000e+00 : f32
      %72 = vector.broadcast %cst_40 : f32 to vector<8x1xf32>
      %73 = arith.mulf %72, %71 : vector<8x1xf32>
      %cst_41 = arith.constant dense<0.000000e+00> : vector<1xf32>
      %74 = vector.multi_reduction <add>, %73, %cst_41 [0] : vector<8x1xf32> to vector<1xf32>
      %75 = vector.shape_cast %74 : vector<1xf32> to vector<1x1xf32>
      %c0_42 = arith.constant 0 : index
      %c0_43 = arith.constant 0 : index
      %76 = vector.load %arg4[%c0_42, %c0_43] : memref<1x1xf32, #tpu.memory_space<vmem>>, vector<1x1xf32>
      tpu.vector_store %arg4[%c0_42, %c0_43], %75 {strides = array<i32>} : memref<1x1xf32, #tpu.memory_space<vmem>>, vector<1x1xf32>,
    } else {
    }
    return
  }
  func.func @transform_0(%arg0: i32) -> (i32, i32) {
    %c0_i32 = arith.constant 0 : i32
    %c0_i32_0 = arith.constant 0 : i32
    return %c0_i32, %arg0 : i32, i32
  }
  func.func @transform_1(%arg0: i32) -> (i32, i32) {
    %c0_i32 = arith.constant 0 : i32
    %c0_i32_0 = arith.constant 0 : i32
    %c0_i32_1 = arith.constant 0 : i32
    return %c0_i32, %c0_i32_0 : i32, i32
  }
  func.func @transform_2(%arg0: i32) -> (i32, i32) {
    %c0_i32 = arith.constant 0 : i32
    %c0_i32_0 = arith.constant 0 : i32
    %c0_i32_1 = arith.constant 0 : i32
    return %c0_i32, %c0_i32_0 : i32, i32
  }
  func.func @transform_3(%arg0: i32) -> (i32, i32) {
    %c0_i32 = arith.constant 0 : i32
    %c0_i32_0 = arith.constant 0 : i32
    %c0_i32_1 = arith.constant 0 : i32
    return %c0_i32, %c0_i32_0 : i32, i32
  }
}

</mosaic_0001>

<llo_original>
// kernel: tpu_custom_call.1
$region0: #{tpu_custom_call.1}
  #allocation0 [shape = 'u32[]', space=smem, size = 0x4, offset = 0x4, fixed_abs, tag = 'smem constant byte address 0x4 - core index']
  #allocation1 [shape = 'u32[144,128]{1,0:T(1,128)}', space=vmem, size = 0x12000, scoped, tag = 'internal scratch']
  #allocation2 [shape = 'f32[8,8]{1,0:T(8,128)}', space=vmem, size = 0x1000, scoped, tag = 'scratch operand']
  #allocation3 [shape = 'f32[8,1]{1,0:T(8,128)}', space=vmem, size = 0x1000, scoped, tag = 'scratch operand']
  #allocation4 [shape = 'f32[1,8]{1,0:T(1,128)}', space=vmem, size = 0x200, scoped, tag = 'scratch operand']
  %s0 = inlined_call_operand.hbm [shape: f32[8,1024], index: 0, kind: input, shape index: {}]
  %s1 = inlined_call_operand.vmem [shape: s32[8,1], index: 1, kind: input, shape index: {}]
  %s2 = inlined_call_operand.vmem [shape: s32[1,8], index: 2, kind: input, shape index: {}]
  %s3 = inlined_call_operand.hbm [shape: f32[1,1], index: 3, kind: output, shape index: {}]
  %s4 = sld [smem:[#allocation0]]
  $region57: #{tpu_custom_call.1} parent=0
    _
  %s6 = ssub.s32 1, %s4
  %s7 = scalar_select 0, %s6, %s4
  $region1: #{tpu_custom_call.1} parent=0
    #allocation5 [shape = 'u8[16384]{0}', space=vmem, size = 0x4000, scoped, tag = 'input window, operand 0']
    #allocation6 [shape = 's32[2]{0}', space=sflag, size = 0x8, scoped, tag = 'scoped memory for tpu_custom_call.1']
    #allocation7 [shape = 's32[2]{0}', space=sflag, size = 0x8, scoped, tag = 'scoped memory for tpu_custom_call.1']
    #allocation8 [shape = 'u8[512]{0}', space=vmem, size = 0x400, scoped, tag = 'output window, operand 0, single buffered']
    %8 = vsyncpa [#allocation6], 0
    %s9 = scalar_lea.sflag [#allocation6], 1
    %10 = vsyncpa %s9, 0
    %11 = vsyncpa [#allocation7], 0
    loop: start=0, step=1, limit=6
    $region2: #{tpu_custom_call.1} parent=1 // loop_pre_header
      _
    $region3: #{tpu_custom_call.1} parent=1 // loop_header
      %s13 = sphi 0, %s17
      %p14 = scmp.ge.s32.totalorder %s13, 6
      %s23 = sphi 0, %s25
      %s26 = sphi 0, %s23
      %s27 = sphi 0, %s26
      %s43 = sphi 0, %s27
      %s47 = sphi 0, %s47
      %s49 = sphi 0, %s47
      %s50 = sphi 0, %s49
      %s64 = sphi 0, %s50
      %s68 = sphi 0, %s68
      %s70 = sphi 0, %s68
      %s71 = sphi 0, %s70
      %s85 = sphi 0, %s71
      %s89 = sphi 0, %s89
      %s91 = sphi 0, %s89
      %s92 = sphi 0, %s91
      %s106 = sphi 0, %s92
    $region4: #{tpu_custom_call.1} parent=1 // loop_header_branch
      %16 = sbr.rel (%p14) target = $region8
    $region5: #{tpu_custom_call.1} parent=1 // loop_body
      %s18 = ssub.s32 %s13, 1
      %s19 = ssub.s32 %s13, 2
      %s20 = sadd.s32 %s13, 1
      %s21 = ssub.s32 %s13, %s20
      %p22 = scmp.eq.s32.totalorder %s21, 0
      %s24 = sadd.s32 %s23, 1
      %s25 = scalar_select %p22, %s23, %s24
      %p28 = pneg %p22
      %p29 = scmp.eq.s32.totalorder %s13, 3
      %p30 = por %p28, %p29
      %p31 = scmp.ne.s32.totalorder %s23, %s26
      %p32 = scmp.eq.s32.totalorder %s13, 0
      %p33 = por %p31, %p32
      %p34 = scmp.ne.s32.totalorder %s23, %s26
      %p35 = scmp.eq.s32.totalorder %s18, 3
      %p36 = por %p34, %p35
      %p37 = scmp.ne.s32.totalorder %s26, %s27
      %p38 = scmp.eq.s32.totalorder %s18, 0
      %p39 = por %p37, %p38
      %p40 = scmp.ne.s32.totalorder %s26, %s27
      %p41 = scmp.eq.s32.totalorder %s19, 3
      %p42 = por %p40, %p41
      %p44 = scmp.ne.s32.totalorder %s27, %s43
      %p45 = scmp.eq.s32.totalorder %s19, 0
      %p46 = por %p44, %p45
      %s48 = sadd.s32 %s47, 1
      %p51 = scmp.eq.s32.totalorder %s13, 3
      %p52 = scmp.ne.s32.totalorder %s47, %s49
      %p53 = scmp.eq.s32.totalorder %s13, 0
      %p54 = por %p52, %p53
      %p55 = scmp.ne.s32.totalorder %s47, %s49
      %p56 = scmp.eq.s32.totalorder %s18, 3
      %p57 = por %p55, %p56
      %p58 = scmp.ne.s32.totalorder %s49, %s50
      %p59 = scmp.eq.s32.totalorder %s18, 0
      %p60 = por %p58, %p59
      %p61 = scmp.ne.s32.totalorder %s49, %s50
      %p62 = scmp.eq.s32.totalorder %s19, 3
      %p63 = por %p61, %p62
      %p65 = scmp.ne.s32.totalorder %s50, %s64
      %p66 = scmp.eq.s32.totalorder %s19, 0
      %p67 = por %p65, %p66
      %s69 = sadd.s32 %s68, 1
      %p72 = scmp.eq.s32.totalorder %s13, 3
      %p73 = scmp.ne.s32.totalorder %s68, %s70
      %p74 = scmp.eq.s32.totalorder %s13, 0
      %p75 = por %p73, %p74
      %p76 = scmp.ne.s32.totalorder %s68, %s70
      %p77 = scmp.eq.s32.totalorder %s18, 3
      %p78 = por %p76, %p77
      %p79 = scmp.ne.s32.totalorder %s70, %s71
      %p80 = scmp.eq.s32.totalorder %s18, 0
      %p81 = por %p79, %p80
      %p82 = scmp.ne.s32.totalorder %s70, %s71
      %p83 = scmp.eq.s32.totalorder %s19, 3
      %p84 = por %p82, %p83
      %p86 = scmp.ne.s32.totalorder %s71, %s85
      %p87 = scmp.eq.s32.totalorder %s19, 0
      %p88 = por %p86, %p87
      %s90 = sadd.s32 %s89, 1
      %p93 = scmp.eq.s32.totalorder %s13, 3
      %p94 = scmp.ne.s32.totalorder %s89, %s91
      %p95 = scmp.eq.s32.totalorder %s13, 0
      %p96 = por %p94, %p95
      %p97 = scmp.ne.s32.totalorder %s89, %s91
      %p98 = scmp.eq.s32.totalorder %s18, 3
      %p99 = por %p97, %p98
      %p100 = scmp.ne.s32.totalorder %s91, %s92
      %p101 = scmp.eq.s32.totalorder %s18, 0
      %p102 = por %p100, %p101
      %p103 = scmp.ne.s32.totalorder %s91, %s92
      %p104 = scmp.eq.s32.totalorder %s19, 3
      %p105 = por %p103, %p104
      %p107 = scmp.ne.s32.totalorder %s92, %s106
      %p108 = scmp.eq.s32.totalorder %s19, 0
      %p109 = por %p107, %p108
      %p110 = scmp.le.s32.totalorder 1, %s13
      %p111 = scmp.lt.s32.totalorder %s13, 5
      %p112 = pnand %p110, %p111
      %p113 = pneg %p112
      // Predicated region
      $region9: #{tpu_custom_call.1} parent=5 // pred_check
        _
      $region10: #{tpu_custom_call.1} parent=5 // pred_check_branch
        %115 = sbr.rel (%p112) target = $region12
      $region11: #{tpu_custom_call.1} parent=5 // pred_region
        %s116 = ssub.s32 %s13, 1
        // Predicated region
        $region13: #{tpu_custom_call.1} parent=11 // pred_check
          %p117 = pneg %p60
        $region14: #{tpu_custom_call.1} parent=11 // pred_check_branch
          %119 = sbr.rel (%p117) target = $region16
        $region15: #{tpu_custom_call.1} parent=11 // pred_region
          _
        $region16: #{tpu_custom_call.1} parent=11 // pred_fallthru
          _
        // Predicated region
        $region17: #{tpu_custom_call.1} parent=11 // pred_check
          %p120 = pneg %p81
        $region18: #{tpu_custom_call.1} parent=11 // pred_check_branch
          %122 = sbr.rel (%p120) target = $region20
        $region19: #{tpu_custom_call.1} parent=11 // pred_region
          _
        $region20: #{tpu_custom_call.1} parent=11 // pred_fallthru
          _
      $region12: #{tpu_custom_call.1} parent=5 // pred_fallthru
        _
      %p123 = scmp.lt.s32.totalorder %s13, 4
      // Predicated region
      $region21: #{tpu_custom_call.1} parent=5 // pred_check
        %p124 = pneg %p123
      $region22: #{tpu_custom_call.1} parent=5 // pred_check_branch
        %126 = sbr.rel (%p124) target = $region24
      $region23: #{tpu_custom_call.1} parent=5 // pred_region
        // Predicated region
        $region25: #{tpu_custom_call.1} parent=23 // pred_check
          %p127 = pneg %p33
        $region26: #{tpu_custom_call.1} parent=23 // pred_check_branch
          %129 = sbr.rel (%p127) target = $region28
        $region27: #{tpu_custom_call.1} parent=23 // pred_region
          %s130 = sand.u32 %s23, 1
          %s131 = scalar_lea.sflag [#allocation6], %s130
          %s132 = sand.u32 %s23, 1
          %s133 = smul.addr %s132, 16
          %s134 = scalar_lea.vmem [#allocation5], %s133
          %s135 = smul.u32 2, %s13
          %s137 = ssub.s32 256, 256
          %138 = vsyncadd %s131, %s137
          %s139 = smul.addr %s135, 128
          %s140 = scalar_lea.hbm %s0, %s139
          %s142 = sshll.u32 %s134, 4
          %s143 = int_to_ptr.vmem [resolvable:$true] %s142
          %145 = dma.hbm_to_vmem [thread:$0]  %s140, 256, %s143, %s131
        $region28: #{tpu_custom_call.1} parent=23 // pred_fallthru
          _
      $region24: #{tpu_custom_call.1} parent=5 // pred_fallthru
        _
      %p146 = scmp.le.s32.totalorder 1, %s13
      %p147 = scmp.lt.s32.totalorder %s13, 5
      %p148 = pnand %p146, %p147
      %p149 = pneg %p148
      // Predicated region
      $region29: #{tpu_custom_call.1} parent=5 // pred_check
        _
      $region30: #{tpu_custom_call.1} parent=5 // pred_check_branch
        %151 = sbr.rel (%p148) target = $region32
      $region31: #{tpu_custom_call.1} parent=5 // pred_region
        %s152 = ssub.s32 %s13, 1
        %s153 = sand.u32 %s26, 1
        %s154 = scalar_lea.sflag [#allocation6], %s153
        %s155 = sand.u32 %s26, 1
        %s156 = smul.addr %s155, 16
        %s157 = scalar_lea.vmem [#allocation5], %s156
        // Predicated region
        $region33: #{tpu_custom_call.1} parent=31 // pred_check
          %p158 = pneg %p39
        $region34: #{tpu_custom_call.1} parent=31 // pred_check_branch
          %160 = sbr.rel (%p158) target = $region36
        $region35: #{tpu_custom_call.1} parent=31 // pred_region
          %161 = dma.done %s154, 256
        $region36: #{tpu_custom_call.1} parent=31 // pred_fallthru
          _
        %s162 = sand.u32 %s26, 1
        %s163 = scalar_lea.sflag [#allocation6], %s162
        %s164 = sand.u32 %s26, 1
        %s165 = smul.addr %s164, 16
        %s166 = scalar_lea.vmem [#allocation5], %s165
        %p167 = pneg %p39
        %p168 = pneg %p36
        %p169 = pneg %p60
        %p170 = pneg %p57
        %p171 = pneg %p81
        %p172 = pneg %p78
        %p173 = pneg %p102
        %p174 = pneg %p99
        %s175 = smul.u32 2, %s18
        %p176 = scmp.eq.s32.totalorder %s18, 0
        // Predicated region
        $region37: #{tpu_custom_call.1} parent=31 // pred_check
          %p177 = pneg %p176
        $region38: #{tpu_custom_call.1} parent=31 // pred_check_branch
          %179 = sbr.rel (%p177) target = $region40
        $region39: #{tpu_custom_call.1} parent=31 // pred_region
          %vm180 = vcmask 64512
          %181 = vst.msk [vmem:[#allocation2] sm:$0xff] %vm180, 0.0
          %vm182 = vcmask 7168
          %183 = vst.msk [vmem:[#allocation3] sm:$0xff] %vm182, 0.0
          %vm184 = vcmask 57344
          %185 = vst.msk [vmem:[#allocation4] sm:$0x1] %vm184, 0.0
        $region40: #{tpu_custom_call.1} parent=31 // pred_fallthru
          _
        %v186 = vld [vmem:[%s157] sm:$0xff]
        %v187 = vld [vmem:[%s157 + $0x8] sm:$0xff]
        %v188 = vmul.f32 %v186, %v186
        %v189 = vmul.f32 %v187, %v187
        %v190 = vld [vmem:[#allocation2] sm:$0xff]
        %191 = vmatprep.subr.mxu0 %v187
        %192 = vmatpush1.xpose.msra.mxu0 %v186
        %193 = vmatprep.subr.mxu0 0.0
        %194 = vmatpush1.xpose.msra.mxu0 0.0
        %195 = vmatprep.subr.mxu0 0.0
        %196 = vmatpush1.xpose.msra.mxu0 0.0
        %197 = vmatprep.subr.mxu0 0.0
        %198 = vmatpush1.xpose.msra.mxu0 0.0
        %199 = vmatprep.subr.mxu0 0.0
        %200 = vmatpush1.xpose.msra.mxu0 0.0
        %201 = vmatprep.subr.mxu0 0.0
        %202 = vmatpush1.xpose.msra.mxu0 0.0
        %203 = vmatprep.subr.mxu0 0.0
        %204 = vmatpush1.xpose.msra.mxu0 0.0
        %205 = vmatprep.subr.mxu0 0.0
        %206 = vmatpush1.xpose.msra.mxu0 0.0
        %207 = vmatprep.subr.mxu0 0.0
        %208 = vmatpush1.xpose.msra.mxu0 0.0
        %209 = vmatprep.subr.mxu0 0.0
        %210 = vmatpush1.xpose.msra.mxu0 0.0
        %211 = vmatprep.subr.mxu0 0.0
        %212 = vmatpush1.xpose.msra.mxu0 0.0
        %213 = vmatprep.subr.mxu0 0.0
        %214 = vmatpush1.xpose.msra.mxu0 0.0
        %215 = vmatprep.subr.mxu0 0.0
        %216 = vmatpush1.xpose.msra.mxu0 0.0
        %217 = vmatprep.subr.mxu0 0.0
        %218 = vmatpush1.xpose.msra.mxu0 0.0
        %219 = vmatprep.subr.mxu0 0.0
        %220 = vmatpush1.xpose.msra.mxu0 0.0
        %221 = vmatprep.subr.mxu0 0.0
        %222 = vmatpush1.xpose.msra.mxu0 0.0
        %223 = vmatprep.subr.mxu0 0.0
        %224 = vmatpush1.xpose.msra.mxu0 0.0
        %225 = vmatprep.subr.mxu0 0.0
        %226 = vmatpush1.xpose.msra.mxu0 0.0
        %227 = vmatprep.subr.mxu0 0.0
        %228 = vmatpush1.xpose.msra.mxu0 0.0
        %229 = vmatprep.subr.mxu0 0.0
        %230 = vmatpush1.xpose.msra.mxu0 0.0
        %231 = vmatprep.subr.mxu0 0.0
        %232 = vmatpush1.xpose.msra.mxu0 0.0
        %233 = vmatprep.subr.mxu0 0.0
        %234 = vmatpush1.xpose.msra.mxu0 0.0
        %235 = vmatprep.subr.mxu0 0.0
        %236 = vmatpush1.xpose.msra.mxu0 0.0
        %237 = vmatprep.subr.mxu0 0.0
        %238 = vmatpush1.xpose.msra.mxu0 0.0
        %239 = vmatprep.subr.mxu0 0.0
        %240 = vmatpush1.xpose.msra.mxu0 0.0
        %241 = vmatprep.subr.mxu0 0.0
        %242 = vmatpush1.xpose.msra.mxu0 0.0
        %243 = vmatprep.subr.mxu0 0.0
        %244 = vmatpush1.xpose.msra.mxu0 0.0
        %245 = vmatprep.subr.mxu0 0.0
        %246 = vmatpush1.xpose.msra.mxu0 0.0
        %247 = vmatprep.subr.mxu0 0.0
        %248 = vmatpush1.xpose.msra.mxu0 0.0
        %249 = vmatprep.subr.mxu0 0.0
        %250 = vmatpush1.xpose.msra.mxu0 0.0
        %251 = vmatprep.subr.mxu0 0.0
        %252 = vmatpush1.xpose.msra.mxu0 0.0
        %253 = vmatprep.subr.mxu0 0.0
        %254 = vmatpush1.xpose.msra.mxu0 0.0
        %255 = vmatprep.mubr.f32.mxu0 %v187
        %256 = vmatmul.mubr.f32.gmra.mrb[0].mxu0 %v186
        %v257 = vpop.f32.mrb[0].mxu0
        %v258 = vadd.f32 0.0, %v257
        %v259 = vpop.f32.mrb[0].mxu0
        %260 = vdwg.mxu0
        %v261 = vadd.f32 %v190, %v258
        %vm262 = vcmask 64512
        %263 = vst.msk [vmem:[#allocation2] sm:$0xff] %vm262, %v261
        %v264 = vld [vmem:[#allocation3] sm:$0xff]
        %v265 = vadd.f32 %v188, %v189
        %266 = vadd.xlane.f32.xlu0 %v265
        %v267 = vpop.xlane.xlu0 %266
        %v268 = vadd.f32 %v264, %v267
        %vm269 = vcmask 7168
        %270 = vst.msk [vmem:[#allocation3] sm:$0xff] %vm269, %v268
        %v271 = vld [vmem:[#allocation4] sm:$0x1]
        %272 = vmatprep.subr.mxu0 %v189
        %273 = vmatpush1.xpose.msra.mxu0 %v188
        %274 = vmatprep.subr.mxu0 0.0
        %275 = vmatpush1.xpose.msra.mxu0 0.0
        %276 = vmatprep.subr.mxu0 0.0
        %277 = vmatpush1.xpose.msra.mxu0 0.0
        %278 = vmatprep.subr.mxu0 0.0
        %279 = vmatpush1.xpose.msra.mxu0 0.0
        %280 = vmatprep.subr.mxu0 0.0
        %281 = vmatpush1.xpose.msra.mxu0 0.0
        %282 = vmatprep.subr.mxu0 0.0
        %283 = vmatpush1.xpose.msra.mxu0 0.0
        %284 = vmatprep.subr.mxu0 0.0
        %285 = vmatpush1.xpose.msra.mxu0 0.0
        %286 = vmatprep.subr.mxu0 0.0
        %287 = vmatpush1.xpose.msra.mxu0 0.0
        %288 = vmatprep.subr.mxu0 0.0
        %289 = vmatpush1.xpose.msra.mxu0 0.0
        %290 = vmatprep.subr.mxu0 0.0
        %291 = vmatpush1.xpose.msra.mxu0 0.0
        %292 = vmatprep.subr.mxu0 0.0
        %293 = vmatpush1.xpose.msra.mxu0 0.0
        %294 = vmatprep.subr.mxu0 0.0
        %295 = vmatpush1.xpose.msra.mxu0 0.0
        %296 = vmatprep.subr.mxu0 0.0
        %297 = vmatpush1.xpose.msra.mxu0 0.0
        %298 = vmatprep.subr.mxu0 0.0
        %299 = vmatpush1.xpose.msra.mxu0 0.0
        %300 = vmatprep.subr.mxu0 0.0
        %301 = vmatpush1.xpose.msra.mxu0 0.0
        %302 = vmatprep.subr.mxu0 0.0
        %303 = vmatpush1.xpose.msra.mxu0 0.0
        %304 = vmatprep.subr.mxu0 0.0
        %305 = vmatpush1.xpose.msra.mxu0 0.0
        %306 = vmatprep.subr.mxu0 0.0
        %307 = vmatpush1.xpose.msra.mxu0 0.0
        %308 = vmatprep.subr.mxu0 0.0
        %309 = vmatpush1.xpose.msra.mxu0 0.0
        %310 = vmatprep.subr.mxu0 0.0
        %311 = vmatpush1.xpose.msra.mxu0 0.0
        %312 = vmatprep.subr.mxu0 0.0
        %313 = vmatpush1.xpose.msra.mxu0 0.0
        %314 = vmatprep.subr.mxu0 0.0
        %315 = vmatpush1.xpose.msra.mxu0 0.0
        %316 = vmatprep.subr.mxu0 0.0
        %317 = vmatpush1.xpose.msra.mxu0 0.0
        %318 = vmatprep.subr.mxu0 0.0
        %319 = vmatpush1.xpose.msra.mxu0 0.0
        %320 = vmatprep.subr.mxu0 0.0
        %321 = vmatpush1.xpose.msra.mxu0 0.0
        %322 = vmatprep.subr.mxu0 0.0
        %323 = vmatpush1.xpose.msra.mxu0 0.0
        %324 = vmatprep.subr.mxu0 0.0
        %325 = vmatpush1.xpose.msra.mxu0 0.0
        %326 = vmatprep.subr.mxu0 0.0
        %327 = vmatpush1.xpose.msra.mxu0 0.0
        %328 = vmatprep.subr.mxu0 0.0
        %329 = vmatpush1.xpose.msra.mxu0 0.0
        %330 = vmatprep.subr.mxu0 0.0
        %331 = vmatpush1.xpose.msra.mxu0 0.0
        %332 = vmatprep.subr.mxu0 0.0
        %333 = vmatpush1.xpose.msra.mxu0 0.0
        %334 = vmatprep.subr.mxu0 0.0
        %335 = vmatpush1.xpose.msra.mxu0 0.0
        %336 = vmatprep.mubr.f32.mxu0 1.0
        %337 = vmatmul.mubr.f32.gmra.mrb[0].mxu0 1.0
        %v338 = vpop.f32.mrb[0].mxu0
        %v339 = vadd.f32 0.0, %v338
        %v340 = vpop.f32.mrb[0].mxu0
        %341 = vdwg.mxu0
        %v342 = vadd.f32 %v271, %v339
        %vm343 = vcmask 57344
        %344 = vst.msk [vmem:[#allocation4] sm:$0x1] %vm343, %v342
        %p345 = scmp.eq.s32.totalorder %s18, 3
        // Predicated region
        $region41: #{tpu_custom_call.1} parent=31 // pred_check
          %p346 = pneg %p345
        $region42: #{tpu_custom_call.1} parent=31 // pred_check_branch
          %348 = sbr.rel (%p346) target = $region44
        $region43: #{tpu_custom_call.1} parent=31 // pred_region
          %v349 = vld [vmem:[#allocation2] sm:$0xff]
          %v350 = vld [vmem:[#allocation3] sm:$0xff]
          %v351 = vld [vmem:[#allocation4] sm:$0x1]
          %353 = vset.pattern.permute.xlu0 0
          %354 = vperm.xlu0 %353, %v350
          %v355 = vpop.permute.xlu0 %354
          %v358 = vlaneseq
          %v359 = vshrl.u32 %v358, 7
          %v360 = vsub.s32 0, %v359
          %v361 = vrot.slane %v351, %v360
          %v363 = vadd.f32 %v355, %v361
          %v364 = vmul.f32 %v349, 2.0
          %v365 = vsub.f32 %v363, %v364
          %v366 = vmax.f32 %v365, 0.0
          %v367 = vmul.f32 %v366, -14.285714
          %v368 = vsel %vm262, %v367, -inf
          %369 = vmax.xlane.f32.xlu0 %v368
          %v370 = vpop.xlane.xlu0 %369
          %v371 = vsub.f32 %v367, %v370
          %v372 = vlaneseq
          %v373 = vshrl.u32 %v372, 7
          %v374 = vlaneseq
          %v375 = vand.u32 %v374, 127
          %vm376 = vcmp.ne.s32.totalorder %v373, %v375
          %v377 = vld [vmem:[%s1] sm:$0xff]
          %v378 = vld [vmem:[%s2] sm:$0x1]
          %379 = vset.pattern.permute.xlu0 0
          %380 = vperm.xlu0 %379, %v377
          %v381 = vpop.permute.xlu0 %380
          %v382 = vlaneseq
          %v383 = vshrl.u32 %v382, 7
          %v384 = vsub.s32 0, %v383
          %v385 = vrot.slane %v378, %v384
          %vm386 = vcmp.eq.s32.totalorder %v381, %v385
          %v387 = vsel %vm376, 1, 0
          %v388 = vcvt.s32.f32 %v387
          %vm389 = vmand %vm386, %vm376
          %v390 = vsel %vm389, 1.0, 0.0
          %v391 = vmul.f32 %v371, 1.442695
          %v392 = vpow.pop %v391
          %v393 = vmul.f32 %v392, %v388
          %v394 = vsel %vm262, %v393, 0.0
          %395 = vadd.xlane.f32.xlu0 %v394
          %v396 = vpop.xlane.xlu0 %395
          %v397 = vadd.f32 %v396, 1e-10
          %v398 = vlog2.pop %v397
          %v399 = vmul.f32 %v398, 0.6931472
          %v400 = vsel %vm262, %v390, 0.0
          %401 = vadd.xlane.f32.xlu0 %v400
          %v402 = vpop.xlane.xlu0 %401
          %v403 = vmul.f32 %v390, %v371
          %v404 = vsel %vm262, %v403, 0.0
          %405 = vadd.xlane.f32.xlu0 %v404
          %v406 = vpop.xlane.xlu0 %405
          %vm407 = vcmp.lt.f32.partialorder %v402, 1e-06
          %v408 = vsel %vm407, 1.0, %v402
          %v409 = vmul.f32 %v399, %v402
          %v410 = vsub.f32 %v406, %v409
          %v411 = vrcp.pop %v408
          %v412 = vmul.f32 %v410, %v411
          %v413 = vmul.f32 %v412, -1.0
          %v414 = vrot.slane %v413, 4
          %v415 = vadd.f32 %v413, %v414
          %v416 = vrot.slane %v415, 2
          %v417 = vadd.f32 %v415, %v416
          %v418 = vrot.slane %v417, 1
          %v419 = vadd.f32 %v417, %v418
          %vm420 = vcmask 0
          %421 = vst.msk [vmem:[#allocation8] sm:$0x1] %vm420, %v419
        $region44: #{tpu_custom_call.1} parent=31 // pred_fallthru
          _
        // Predicated region
        $region45: #{tpu_custom_call.1} parent=31 // pred_check
          %p422 = pneg %p99
        $region46: #{tpu_custom_call.1} parent=31 // pred_check_branch
          %424 = sbr.rel (%p422) target = $region48
        $region47: #{tpu_custom_call.1} parent=31 // pred_region
          %s426 = ssub.s32 16, 16
          %427 = vsyncadd [#allocation7], %s426
          %s429 = sshll.u32 [#allocation8], 4
          %s430 = int_to_ptr.vmem [resolvable:$true] %s429
          %432 = dma.vmem_to_hbm [thread:$0]  %s430, 16, %s3, [#allocation7]
        $region48: #{tpu_custom_call.1} parent=31 // pred_fallthru
          _
        // Predicated region
        $region49: #{tpu_custom_call.1} parent=31 // pred_check
          %p433 = pneg %p99
        $region50: #{tpu_custom_call.1} parent=31 // pred_check_branch
          %435 = sbr.rel (%p433) target = $region52
        $region51: #{tpu_custom_call.1} parent=31 // pred_region
          %436 = dma.done [#allocation7], 16
        $region52: #{tpu_custom_call.1} parent=31 // pred_fallthru
          _
      $region32: #{tpu_custom_call.1} parent=5 // pred_fallthru
        _
      %p437 = scmp.le.s32.totalorder 2, %s13
      // Predicated region
      $region53: #{tpu_custom_call.1} parent=5 // pred_check
        %p438 = pneg %p437
      $region54: #{tpu_custom_call.1} parent=5 // pred_check_branch
        %440 = sbr.rel (%p438) target = $region56
      $region55: #{tpu_custom_call.1} parent=5 // pred_region
        %s441 = ssub.s32 %s13, 2
      $region56: #{tpu_custom_call.1} parent=5 // pred_fallthru
        _
    $region6: #{tpu_custom_call.1} parent=1 // loop_footer
      %s17 = sadd.s32 1, %s13
    $region7: #{tpu_custom_call.1} parent=1 // loop_footer_branch
      %12 = sbr.rel target = $region3
    $region8: #{tpu_custom_call.1} parent=1 // loop_exit
      _
    %442 = vsyncpa [#allocation6], 1
    %s443 = scalar_lea.sflag [#allocation6], 1
    %444 = vsyncpa %s443, 1
    %445 = vsyncpa [#allocation7], 1
    %s446 = scalar_lea.sflag [#allocation7], 1
    %447 = vsyncpa %s446, 1

</llo_original>
